<compile_context>
chip_gen: v7x
topology: tpu7x:2x2x1
jax: 0.10.0
libtpu: 0.0.40
codegen_flags: <defaults>
</compile_context>

<pallas_src>
import functools

import jax
import jax.numpy as jnp
from jax.experimental import pallas as pl
from jax.experimental.pallas import tpu as pltpu

F = 128               # padded feature width (lane dim)
IN_FEATURES = 2       # (x, t)
DEFAULT_TB = 512      # batch tile (sweep 256-1024)

# (in, out) feature sizes of the 9 linear layers (last one = regressor).
LAYER_DIMS = [(2, 5), (5, 20), (20, 40), (40, 40), (40, 40),
              (40, 20), (20, 10), (10, 5), (5, 1)]
N_LAYERS = len(LAYER_DIMS)


def _round_up(n, m):
    return ((n + m - 1) // m) * m


def pinn_kernel(x_ref, w_ref, b_ref, o_ref, *, compute_dtype):
    # x_ref: (TB, 2)  raw (x, t)
    # w_ref: (N_LAYERS, F, F)  compute_dtype, zero padded
    # b_ref: (N_LAYERS, 1, F)  float32, zero padded
    # o_ref: (TB, 1)
    #
    # Layer 1 has K=2: do it as two rank-1 broadcast mul-adds on the VPU in
    # f32 instead of materializing a 128-lane padded input.
    x = x_ref[...].astype(jnp.float32)                       # (TB, 2)
    w0 = w_ref[0].astype(jnp.float32)                        # (F, F)
    z = x[:, 0:1] * w0[0:1, :] + x[:, 1:2] * w0[1:2, :] + b_ref[0]
    h = jnp.tanh(z.astype(compute_dtype))                    # (TB, F)

    # Hidden layers 2..8: MXU matmul (compute_dtype operands, f32 accumulate),
    # bias add in f32, tanh in compute_dtype (bf16 EUP path on v6e/v7x).
    for i in range(1, N_LAYERS - 1):
        z = jnp.dot(h, w_ref[i], preferred_element_type=jnp.float32) + b_ref[i]
        h = jnp.tanh(z.astype(compute_dtype))

    # Regressor: Linear, no activation, kept in f32.
    z = (jnp.dot(h, w_ref[N_LAYERS - 1], preferred_element_type=jnp.float32)
         + b_ref[N_LAYERS - 1])
    # Only lane 0 is meaningful -> lane-narrow store.
    o_ref[...] = z[:, 0:1].astype(o_ref.dtype)


def pack_params(weights, biases, compute_dtype=jnp.float32):
    """Pad parameters once into stacked slabs (call at init, not per forward)."""
    w_pad = jnp.zeros((N_LAYERS, F, F), compute_dtype)
    b_pad = jnp.zeros((N_LAYERS, 1, F), jnp.float32)
    for i, (fi, fo) in enumerate(LAYER_DIMS):
        w_pad = w_pad.at[i, :fi, :fo].set(weights[i].astype(compute_dtype))
        b_pad = b_pad.at[i, 0, :fo].set(biases[i].astype(jnp.float32))
    return w_pad, b_pad


def pinn_forward(x, t, w_pad, b_pad, *, tb=DEFAULT_TB):
    """x, t: (N, 1) float32.  w_pad/b_pad: from pack_params().  Returns (N, 1)."""
    inputs = jnp.concatenate([x, t], axis=1).astype(jnp.float32)   # (N, 2)
    n = inputs.shape[0]

    # Effective batch tile: sublane-aligned, never larger than needed.
    tb = max(8, _round_up(min(tb, _round_up(n, 8)), 8))
    n_pad = _round_up(n, tb)
    if n_pad != n:
        inputs = jnp.pad(inputs, ((0, n_pad - n), (0, 0)))

    kernel = functools.partial(pinn_kernel, compute_dtype=w_pad.dtype)

    out = pl.pallas_call(
        kernel,
        out_shape=jax.ShapeDtypeStruct((n_pad, 1), jnp.float32),
        grid_spec=pltpu.PrefetchScalarGridSpec(
            num_scalar_prefetch=0,
            grid=(n_pad // tb,),
            in_specs=[
                # (TB, 2): last dim equals full array dim -> legal block.
                pl.BlockSpec((tb, IN_FEATURES), lambda i: (i, 0)),
                # Grid-invariant parameter slabs (constant index_map).
                pl.BlockSpec((N_LAYERS, F, F), lambda i: (0, 0, 0)),
                pl.BlockSpec((N_LAYERS, 1, F), lambda i: (0, 0, 0)),
            ],
            out_specs=pl.BlockSpec((tb, 1), lambda i: (i, 0)),
        ),
        compiler_params=pltpu.CompilerParams(
            dimension_semantics=("parallel",)),
    )(inputs, w_pad, b_pad)

    return out[:n]                                             # (N, 1)


def init_params(key):
    """Deterministic init matching nn.Linear shapes (stored as (in, out))."""
    weights, biases = [], []
    for fi, fo in LAYER_DIMS:
        kw, kb, key = jax.random.split(key, 3)
        bound = 1.0 / jnp.sqrt(float(fi))
        weights.append(jax.random.uniform(kw, (fi, fo), jnp.float32,
                                          -bound, bound))
        biases.append(jax.random.uniform(kb, (fo,), jnp.float32,
                                         -bound, bound))
    return weights, biases


def reference_forward(x, t, weights, biases):
    h = jnp.concatenate([x, t], axis=1)
    for i in range(N_LAYERS - 1):
        h = jnp.tanh(h @ weights[i] + biases[i])
    return h @ weights[-1] + biases[-1]


if __name__ == "__main__":
    key = jax.random.PRNGKey(0)
    kx1, kt1, kp, kx2, kt2 = jax.random.split(key, 5)
    weights, biases = init_params(kp)

    # --- 1) small batch, f32 compute path (v5e-friendly), strict check ---
    N1 = 8
    x1 = jax.random.normal(kx1, (N1, 1), jnp.float32)
    t1 = jax.random.normal(kt1, (N1, 1), jnp.float32)
    w32, b32 = pack_params(weights, biases, jnp.float32)
    out1 = jax.block_until_ready(pinn_forward(x1, t1, w32, b32, tb=256))
    ref1 = reference_forward(x1, t1, weights, biases)
    assert out1.shape == (N1, 1), out1.shape
    assert jnp.allclose(out1, ref1, atol=1e-5, rtol=1e-5), (out1, ref1)

    # --- 2) larger batch, bf16 operands (v6e/v7x MXU/EUP path), multi-tile ---
    N2 = 1000
    x2 = jax.random.normal(kx2, (N2, 1), jnp.float32)
    t2 = jax.random.normal(kt2, (N2, 1), jnp.float32)
    wbf, bbf = pack_params(weights, biases, jnp.bfloat16)
    out2 = jax.block_until_ready(pinn_forward(x2, t2, wbf, bbf, tb=512))
    ref2 = reference_forward(x2, t2, weights, biases)
    assert out2.shape == (N2, 1), out2.shape
    assert jnp.allclose(out2, ref2, atol=5e-2, rtol=5e-2), (
        float(jnp.max(jnp.abs(out2 - ref2))))

    print("KERNEL_OK")
</pallas_src>

<mosaic_0001>
module attributes {stable_mosaic.version = 11 : i64} {
  func.func @pinn_kernel(%arg0: i32, %arg1: memref<8x2xf32, #tpu.memory_space<vmem>>, %arg2: memref<9x128x128xf32, #tpu.memory_space<vmem>>, %arg3: memref<9x1x128xf32, #tpu.memory_space<vmem>>, %arg4: memref<8x1xf32, #tpu.memory_space<vmem>>) attributes {dimension_semantics = [#tpu.dimension_semantics<parallel>], iteration_bounds = array<i64: 1>, scalar_prefetch = 0 : i64, scratch_operands = 0 : i64, tpu.core_type = #tpu.core_type<tc>, window_params = [{transform_indices = @transform_0, window_bounds = array<i64: 8, 2>}, {pipeline_mode = #tpu.pipeline_mode<synchronous>, transform_indices = @transform_1, window_bounds = array<i64: 9, 128, 128>}, {pipeline_mode = #tpu.pipeline_mode<synchronous>, transform_indices = @transform_2, window_bounds = array<i64: 9, 1, 128>}, {transform_indices = @transform_3, window_bounds = array<i64: 8, 1>}]} {
    %c0 = arith.constant 0 : index
    %c0_0 = arith.constant 0 : index
    %0 = vector.load %arg1[%c0, %c0_0] : memref<8x2xf32, #tpu.memory_space<vmem>>, vector<8x2xf32>
    %c0_1 = arith.constant 0 : index
    %c0_2 = arith.constant 0 : index
    %c0_3 = arith.constant 0 : index
    %1 = vector.load %arg2[%c0_1, %c0_2, %c0_3] : memref<9x128x128xf32, #tpu.memory_space<vmem>>, vector<1x128x128xf32>
    %2 = vector.shape_cast %1 : vector<1x128x128xf32> to vector<128x128xf32>
    %3 = vector.extract_strided_slice %0 {offsets = [0, 0], sizes = [8, 1], strides = [1, 1]} : vector<8x2xf32> to vector<8x1xf32>
    %4 = vector.extract_strided_slice %2 {offsets = [0, 0], sizes = [1, 128], strides = [1, 1]} : vector<128x128xf32> to vector<1x128xf32>
    %5 = vector.broadcast %3 : vector<8x1xf32> to vector<8x128xf32>
    %6 = vector.broadcast %4 : vector<1x128xf32> to vector<8x128xf32>
    %7 = arith.mulf %5, %6 : vector<8x128xf32>
    %8 = vector.extract_strided_slice %0 {offsets = [0, 1], sizes = [8, 1], strides = [1, 1]} : vector<8x2xf32> to vector<8x1xf32>
    %9 = vector.extract_strided_slice %2 {offsets = [1, 0], sizes = [1, 128], strides = [1, 1]} : vector<128x128xf32> to vector<1x128xf32>
    %10 = vector.broadcast %8 : vector<8x1xf32> to vector<8x128xf32>
    %11 = vector.broadcast %9 : vector<1x128xf32> to vector<8x128xf32>
    %12 = arith.mulf %10, %11 : vector<8x128xf32>
    %13 = arith.addf %7, %12 : vector<8x128xf32>
    %c0_4 = arith.constant 0 : index
    %c0_5 = arith.constant 0 : index
    %c0_6 = arith.constant 0 : index
    %14 = vector.load %arg3[%c0_4, %c0_5, %c0_6] : memref<9x1x128xf32, #tpu.memory_space<vmem>>, vector<1x1x128xf32>
    %15 = vector.shape_cast %14 : vector<1x1x128xf32> to vector<1x128xf32>
    %16 = vector.broadcast %15 : vector<1x128xf32> to vector<8x128xf32>
    %17 = arith.addf %13, %16 : vector<8x128xf32>
    %18 = math.tanh %17 : vector<8x128xf32>
    %c1 = arith.constant 1 : index
    %c0_7 = arith.constant 0 : index
    %c0_8 = arith.constant 0 : index
    %19 = vector.load %arg2[%c1, %c0_7, %c0_8] : memref<9x128x128xf32, #tpu.memory_space<vmem>>, vector<1x128x128xf32>
    %20 = vector.shape_cast %19 : vector<1x128x128xf32> to vector<128x128xf32>
    %cst = arith.constant dense<0.000000e+00> : vector<8x128xf32>
    %21 = tpu.matmul %18, %20, %cst {dimension_numbers = #tpu.dot_dimension_numbers<[1], [0], [0], [1], [0, 0, 1, 1], [], []>} : vector<8x128xf32>, vector<128x128xf32>, vector<8x128xf32> -> vector<8x128xf32>
    %c1_9 = arith.constant 1 : index
    %c0_10 = arith.constant 0 : index
    %c0_11 = arith.constant 0 : index
    %22 = vector.load %arg3[%c1_9, %c0_10, %c0_11] : memref<9x1x128xf32, #tpu.memory_space<vmem>>, vector<1x1x128xf32>
    %23 = vector.shape_cast %22 : vector<1x1x128xf32> to vector<1x128xf32>
    %24 = vector.broadcast %23 : vector<1x128xf32> to vector<8x128xf32>
    %25 = arith.addf %21, %24 : vector<8x128xf32>
    %26 = math.tanh %25 : vector<8x128xf32>
    %c2 = arith.constant 2 : index
    %c0_12 = arith.constant 0 : index
    %c0_13 = arith.constant 0 : index
    %27 = vector.load %arg2[%c2, %c0_12, %c0_13] : memref<9x128x128xf32, #tpu.memory_space<vmem>>, vector<1x128x128xf32>
    %28 = vector.shape_cast %27 : vector<1x128x128xf32> to vector<128x128xf32>
    %cst_14 = arith.constant dense<0.000000e+00> : vector<8x128xf32>
    %29 = tpu.matmul %26, %28, %cst_14 {dimension_numbers = #tpu.dot_dimension_numbers<[1], [0], [0], [1], [0, 0, 1, 1], [], []>} : vector<8x128xf32>, vector<128x128xf32>, vector<8x128xf32> -> vector<8x128xf32>
    %c2_15 = arith.constant 2 : index
    %c0_16 = arith.constant 0 : index
    %c0_17 = arith.constant 0 : index
    %30 = vector.load %arg3[%c2_15, %c0_16, %c0_17] : memref<9x1x128xf32, #tpu.memory_space<vmem>>, vector<1x1x128xf32>
    %31 = vector.shape_cast %30 : vector<1x1x128xf32> to vector<1x128xf32>
    %32 = vector.broadcast %31 : vector<1x128xf32> to vector<8x128xf32>
    %33 = arith.addf %29, %32 : vector<8x128xf32>
    %34 = math.tanh %33 : vector<8x128xf32>
    %c3 = arith.constant 3 : index
    %c0_18 = arith.constant 0 : index
    %c0_19 = arith.constant 0 : index
    %35 = vector.load %arg2[%c3, %c0_18, %c0_19] : memref<9x128x128xf32, #tpu.memory_space<vmem>>, vector<1x128x128xf32>
    %36 = vector.shape_cast %35 : vector<1x128x128xf32> to vector<128x128xf32>
    %cst_20 = arith.constant dense<0.000000e+00> : vector<8x128xf32>
    %37 = tpu.matmul %34, %36, %cst_20 {dimension_numbers = #tpu.dot_dimension_numbers<[1], [0], [0], [1], [0, 0, 1, 1], [], []>} : vector<8x128xf32>, vector<128x128xf32>, vector<8x128xf32> -> vector<8x128xf32>
    %c3_21 = arith.constant 3 : index
    %c0_22 = arith.constant 0 : index
    %c0_23 = arith.constant 0 : index
    %38 = vector.load %arg3[%c3_21, %c0_22, %c0_23] : memref<9x1x128xf32, #tpu.memory_space<vmem>>, vector<1x1x128xf32>
    %39 = vector.shape_cast %38 : vector<1x1x128xf32> to vector<1x128xf32>
    %40 = vector.broadcast %39 : vector<1x128xf32> to vector<8x128xf32>
    %41 = arith.addf %37, %40 : vector<8x128xf32>
    %42 = math.tanh %41 : vector<8x128xf32>
    %c4 = arith.constant 4 : index
    %c0_24 = arith.constant 0 : index
    %c0_25 = arith.constant 0 : index
    %43 = vector.load %arg2[%c4, %c0_24, %c0_25] : memref<9x128x128xf32, #tpu.memory_space<vmem>>, vector<1x128x128xf32>
    %44 = vector.shape_cast %43 : vector<1x128x128xf32> to vector<128x128xf32>
    %cst_26 = arith.constant dense<0.000000e+00> : vector<8x128xf32>
    %45 = tpu.matmul %42, %44, %cst_26 {dimension_numbers = #tpu.dot_dimension_numbers<[1], [0], [0], [1], [0, 0, 1, 1], [], []>} : vector<8x128xf32>, vector<128x128xf32>, vector<8x128xf32> -> vector<8x128xf32>
    %c4_27 = arith.constant 4 : index
    %c0_28 = arith.constant 0 : index
    %c0_29 = arith.constant 0 : index
    %46 = vector.load %arg3[%c4_27, %c0_28, %c0_29] : memref<9x1x128xf32, #tpu.memory_space<vmem>>, vector<1x1x128xf32>
    %47 = vector.shape_cast %46 : vector<1x1x128xf32> to vector<1x128xf32>
    %48 = vector.broadcast %47 : vector<1x128xf32> to vector<8x128xf32>
    %49 = arith.addf %45, %48 : vector<8x128xf32>
    %50 = math.tanh %49 : vector<8x128xf32>
    %c5 = arith.constant 5 : index
    %c0_30 = arith.constant 0 : index
    %c0_31 = arith.constant 0 : index
    %51 = vector.load %arg2[%c5, %c0_30, %c0_31] : memref<9x128x128xf32, #tpu.memory_space<vmem>>, vector<1x128x128xf32>
    %52 = vector.shape_cast %51 : vector<1x128x128xf32> to vector<128x128xf32>
    %cst_32 = arith.constant dense<0.000000e+00> : vector<8x128xf32>
    %53 = tpu.matmul %50, %52, %cst_32 {dimension_numbers = #tpu.dot_dimension_numbers<[1], [0], [0], [1], [0, 0, 1, 1], [], []>} : vector<8x128xf32>, vector<128x128xf32>, vector<8x128xf32> -> vector<8x128xf32>
    %c5_33 = arith.constant 5 : index
    %c0_34 = arith.constant 0 : index
    %c0_35 = arith.constant 0 : index
    %54 = vector.load %arg3[%c5_33, %c0_34, %c0_35] : memref<9x1x128xf32, #tpu.memory_space<vmem>>, vector<1x1x128xf32>
    %55 = vector.shape_cast %54 : vector<1x1x128xf32> to vector<1x128xf32>
    %56 = vector.broadcast %55 : vector<1x128xf32> to vector<8x128xf32>
    %57 = arith.addf %53, %56 : vector<8x128xf32>
    %58 = math.tanh %57 : vector<8x128xf32>
    %c6 = arith.constant 6 : index
    %c0_36 = arith.constant 0 : index
    %c0_37 = arith.constant 0 : index
    %59 = vector.load %arg2[%c6, %c0_36, %c0_37] : memref<9x128x128xf32, #tpu.memory_space<vmem>>, vector<1x128x128xf32>
    %60 = vector.shape_cast %59 : vector<1x128x128xf32> to vector<128x128xf32>
    %cst_38 = arith.constant dense<0.000000e+00> : vector<8x128xf32>
    %61 = tpu.matmul %58, %60, %cst_38 {dimension_numbers = #tpu.dot_dimension_numbers<[1], [0], [0], [1], [0, 0, 1, 1], [], []>} : vector<8x128xf32>, vector<128x128xf32>, vector<8x128xf32> -> vector<8x128xf32>
    %c6_39 = arith.constant 6 : index
    %c0_40 = arith.constant 0 : index
    %c0_41 = arith.constant 0 : index
    %62 = vector.load %arg3[%c6_39, %c0_40, %c0_41] : memref<9x1x128xf32, #tpu.memory_space<vmem>>, vector<1x1x128xf32>
    %63 = vector.shape_cast %62 : vector<1x1x128xf32> to vector<1x128xf32>
    %64 = vector.broadcast %63 : vector<1x128xf32> to vector<8x128xf32>
    %65 = arith.addf %61, %64 : vector<8x128xf32>
    %66 = math.tanh %65 : vector<8x128xf32>
    %c7 = arith.constant 7 : index
    %c0_42 = arith.constant 0 : index
    %c0_43 = arith.constant 0 : index
    %67 = vector.load %arg2[%c7, %c0_42, %c0_43] : memref<9x128x128xf32, #tpu.memory_space<vmem>>, vector<1x128x128xf32>
    %68 = vector.shape_cast %67 : vector<1x128x128xf32> to vector<128x128xf32>
    %cst_44 = arith.constant dense<0.000000e+00> : vector<8x128xf32>
    %69 = tpu.matmul %66, %68, %cst_44 {dimension_numbers = #tpu.dot_dimension_numbers<[1], [0], [0], [1], [0, 0, 1, 1], [], []>} : vector<8x128xf32>, vector<128x128xf32>, vector<8x128xf32> -> vector<8x128xf32>
    %c7_45 = arith.constant 7 : index
    %c0_46 = arith.constant 0 : index
    %c0_47 = arith.constant 0 : index
    %70 = vector.load %arg3[%c7_45, %c0_46, %c0_47] : memref<9x1x128xf32, #tpu.memory_space<vmem>>, vector<1x1x128xf32>
    %71 = vector.shape_cast %70 : vector<1x1x128xf32> to vector<1x128xf32>
    %72 = vector.broadcast %71 : vector<1x128xf32> to vector<8x128xf32>
    %73 = arith.addf %69, %72 : vector<8x128xf32>
    %74 = math.tanh %73 : vector<8x128xf32>
    %c8 = arith.constant 8 : index
    %c0_48 = arith.constant 0 : index
    %c0_49 = arith.constant 0 : index
    %75 = vector.load %arg2[%c8, %c0_48, %c0_49] : memref<9x128x128xf32, #tpu.memory_space<vmem>>, vector<1x128x128xf32>
    %76 = vector.shape_cast %75 : vector<1x128x128xf32> to vector<128x128xf32>
    %cst_50 = arith.constant dense<0.000000e+00> : vector<8x128xf32>
    %77 = tpu.matmul %74, %76, %cst_50 {dimension_numbers = #tpu.dot_dimension_numbers<[1], [0], [0], [1], [0, 0, 1, 1], [], []>} : vector<8x128xf32>, vector<128x128xf32>, vector<8x128xf32> -> vector<8x128xf32>
    %c8_51 = arith.constant 8 : index
    %c0_52 = arith.constant 0 : index
    %c0_53 = arith.constant 0 : index
    %78 = vector.load %arg3[%c8_51, %c0_52, %c0_53] : memref<9x1x128xf32, #tpu.memory_space<vmem>>, vector<1x1x128xf32>
    %79 = vector.shape_cast %78 : vector<1x1x128xf32> to vector<1x128xf32>
    %80 = vector.broadcast %79 : vector<1x128xf32> to vector<8x128xf32>
    %81 = arith.addf %77, %80 : vector<8x128xf32>
    %82 = vector.extract_strided_slice %81 {offsets = [0, 0], sizes = [8, 1], strides = [1, 1]} : vector<8x128xf32> to vector<8x1xf32>
    %c0_54 = arith.constant 0 : index
    %c0_55 = arith.constant 0 : index
    %83 = vector.load %arg4[%c0_54, %c0_55] : memref<8x1xf32, #tpu.memory_space<vmem>>, vector<8x1xf32>
    tpu.vector_store %arg4[%c0_54, %c0_55], %82 {strides = array<i32>} : memref<8x1xf32, #tpu.memory_space<vmem>>, vector<8x1xf32>,
    return
  }
  func.func @transform_0(%arg0: i32) -> (i32, i32) {
    %c0_i32 = arith.constant 0 : i32
    %c0_i32_0 = arith.constant 0 : i32
    return %arg0, %c0_i32 : i32, i32
  }
  func.func @transform_1(%arg0: i32) -> (i32, i32, i32) {
    %c0_i32 = arith.constant 0 : i32
    %c0_i32_0 = arith.constant 0 : i32
    %c0_i32_1 = arith.constant 0 : i32
    %c0_i32_2 = arith.constant 0 : i32
    return %c0_i32, %c0_i32_0, %c0_i32_1 : i32, i32, i32
  }
  func.func @transform_2(%arg0: i32) -> (i32, i32, i32) {
    %c0_i32 = arith.constant 0 : i32
    %c0_i32_0 = arith.constant 0 : i32
    %c0_i32_1 = arith.constant 0 : i32
    %c0_i32_2 = arith.constant 0 : i32
    return %c0_i32, %c0_i32_0, %c0_i32_1 : i32, i32, i32
  }
  func.func @transform_3(%arg0: i32) -> (i32, i32) {
    %c0_i32 = arith.constant 0 : i32
    %c0_i32_0 = arith.constant 0 : i32
    return %arg0, %c0_i32 : i32, i32
  }
}

</mosaic_0001>

<llo_original>
// kernel: tpu_custom_call.1
$region0: #{tpu_custom_call.1}
  #allocation0 [shape = 'u32[]', space=smem, size = 0x4, offset = 0x4, fixed_abs, tag = 'smem constant byte address 0x4 - core index']
  #allocation1 [shape = 'u32[144,128]{1,0:T(1,128)}', space=vmem, size = 0x12000, scoped, tag = 'internal scratch']
  %s0 = inlined_call_operand.vmem [shape: f32[8,2], index: 0, kind: input, shape index: {}]
  %s1 = inlined_call_operand.hbm [shape: f32[9,128,128], index: 1, kind: input, shape index: {}]
  %s2 = inlined_call_operand.vmem [shape: f32[9,1,128], index: 2, kind: input, shape index: {}]
  %s3 = inlined_call_operand.vmem [shape: f32[8,1], index: 3, kind: output, shape index: {}]
  %s4 = sld [smem:[#allocation0]]
  $region26: #{tpu_custom_call.1} parent=0
    _
  %s6 = ssub.s32 1, %s4
  %s7 = scalar_select 0, %s6, %s4
  $region1: #{tpu_custom_call.1} parent=0
    #allocation2 [shape = 'u8[589824]{0}', space=vmem, size = 0x90000, scoped, tag = 'input window, operand 1, single buffered']
    #allocation3 [shape = 's32[1]{0}', space=sflag, size = 0x4, scoped, tag = 'scoped memory for tpu_custom_call.1']
    %8 = vsyncpa [#allocation3], 0
    // Predicated region
    $region2: #{tpu_custom_call.1} parent=1 // pred_check
      _
    $region3: #{tpu_custom_call.1} parent=1 // pred_check_branch
      %10 = sbr.rel (0) target = $region5
    $region4: #{tpu_custom_call.1} parent=1 // pred_region
      _
    $region5: #{tpu_custom_call.1} parent=1 // pred_fallthru
      _
    // Predicated region
    $region6: #{tpu_custom_call.1} parent=1 // pred_check
      _
    $region7: #{tpu_custom_call.1} parent=1 // pred_check_branch
      %12 = sbr.rel (0) target = $region9
    $region8: #{tpu_custom_call.1} parent=1 // pred_region
      %s14 = ssub.s32 18432, 18432
      %15 = vsyncadd [#allocation3], %s14
      %s16 = sshll.u32 [#allocation2], 4
      %s17 = int_to_ptr.vmem [resolvable:$true] %s16
      %22 = dma.hbm_to_vmem [thread:$0]  %s1, 18432, %s17, [#allocation3], 128, 128, 8
    $region9: #{tpu_custom_call.1} parent=1 // pred_fallthru
      _
    // Predicated region
    $region10: #{tpu_custom_call.1} parent=1 // pred_check
      _
    $region11: #{tpu_custom_call.1} parent=1 // pred_check_branch
      %24 = sbr.rel (0) target = $region13
    $region12: #{tpu_custom_call.1} parent=1 // pred_region
      _
    $region13: #{tpu_custom_call.1} parent=1 // pred_fallthru
      _
    // Predicated region
    $region14: #{tpu_custom_call.1} parent=1 // pred_check
      _
    $region15: #{tpu_custom_call.1} parent=1 // pred_check_branch
      %26 = sbr.rel (0) target = $region17
    $region16: #{tpu_custom_call.1} parent=1 // pred_region
      %27 = dma.done [#allocation3], 18432
    $region17: #{tpu_custom_call.1} parent=1 // pred_fallthru
      _
    %v28 = vld [vmem:[%s0] sm:$0xff]
    %v29 = vld [vmem:[#allocation2] sm:$0xff]
    %31 = vset.pattern.permute.xlu0 0
    %32 = vperm.xlu0 %31, %v28
    %v33 = vpop.permute.xlu0 %32
    %v35 = vlaneseq
    %v36 = vshrl.u32 %v35, 7
    %v37 = vsub.s32 0, %v36
    %v38 = vrot.slane %v29, %v37
    %v39 = vmul.f32 %v33, %v38
    %40 = vset.pattern.permute.xlu0 1
    %41 = vperm.xlu0 %40, %v28
    %v42 = vpop.permute.xlu0 %41
    %v44 = vlaneseq
    %v45 = vshrl.u32 %v44, 7
    %v46 = vsub.s32 1, %v45
    %v47 = vrot.slane %v29, %v46
    %v48 = vmul.f32 %v42, %v47
    %v49 = vadd.f32 %v39, %v48
    %v50 = vld [vmem:[%s2] sm:$0x1]
    %v52 = vlaneseq
    %v53 = vshrl.u32 %v52, 7
    %v54 = vsub.s32 0, %v53
    %v55 = vrot.slane %v50, %v54
    %v57 = vadd.f32 %v49, %v55
    %v58 = vtanh.pop %v57
    %s59 = scalar_lea.vmem [#allocation2], 128
    %v60 = vld [vmem:[%s59] sm:$0xff]
    %v61 = vld [vmem:[%s59 + $0x8] sm:$0xff]
    %v62 = vld [vmem:[%s59 + $0x10] sm:$0xff]
    %v63 = vld [vmem:[%s59 + $0x18] sm:$0xff]
    %v64 = vld [vmem:[%s59 + $0x20] sm:$0xff]
    %v65 = vld [vmem:[%s59 + $0x28] sm:$0xff]
    %v66 = vld [vmem:[%s59 + $0x30] sm:$0xff]
    %v67 = vld [vmem:[%s59 + $0x38] sm:$0xff]
    %v68 = vld [vmem:[%s59 + $0x40] sm:$0xff]
    %v69 = vld [vmem:[%s59 + $0x48] sm:$0xff]
    %v70 = vld [vmem:[%s59 + $0x50] sm:$0xff]
    %v71 = vld [vmem:[%s59 + $0x58] sm:$0xff]
    %v72 = vld [vmem:[%s59 + $0x60] sm:$0xff]
    %v73 = vld [vmem:[%s59 + $0x68] sm:$0xff]
    %v74 = vld [vmem:[%s59 + $0x70] sm:$0xff]
    %v75 = vld [vmem:[%s59 + $0x78] sm:$0xff]
    %s76 = scalar_lea.vmem %s2, 1
    %v77 = vld [vmem:[%s76] sm:$0x1]
    %v79 = vlaneseq
    %v80 = vshrl.u32 %v79, 7
    %v81 = vsub.s32 0, %v80
    %v82 = vrot.slane %v77, %v81
    %84 = vmatprep.subr.mxu0 0.0
    %85 = vmatpush1.msra.mxu0 %v60
    %86 = vmatprep.subr.mxu0 0.0
    %87 = vmatpush1.msra.mxu0 %v61
    %88 = vmatprep.subr.mxu0 0.0
    %89 = vmatpush1.msra.mxu0 %v62
    %90 = vmatprep.subr.mxu0 0.0
    %91 = vmatpush1.msra.mxu0 %v63
    %92 = vmatprep.subr.mxu0 0.0
    %93 = vmatpush1.msra.mxu0 %v64
    %94 = vmatprep.subr.mxu0 0.0
    %95 = vmatpush1.msra.mxu0 %v65
    %96 = vmatprep.subr.mxu0 0.0
    %97 = vmatpush1.msra.mxu0 %v66
    %98 = vmatprep.subr.mxu0 0.0
    %99 = vmatpush1.msra.mxu0 %v67
    %100 = vmatprep.subr.mxu0 0.0
    %101 = vmatpush1.msra.mxu0 %v68
    %102 = vmatprep.subr.mxu0 0.0
    %103 = vmatpush1.msra.mxu0 %v69
    %104 = vmatprep.subr.mxu0 0.0
    %105 = vmatpush1.msra.mxu0 %v70
    %106 = vmatprep.subr.mxu0 0.0
    %107 = vmatpush1.msra.mxu0 %v71
    %108 = vmatprep.subr.mxu0 0.0
    %109 = vmatpush1.msra.mxu0 %v72
    %110 = vmatprep.subr.mxu0 0.0
    %111 = vmatpush1.msra.mxu0 %v73
    %112 = vmatprep.subr.mxu0 0.0
    %113 = vmatpush1.msra.mxu0 %v74
    %114 = vmatprep.subr.mxu0 0.0
    %115 = vmatpush1.msra.mxu0 %v75
    %116 = vmatprep.subr.mxu0 0.0
    %117 = vmatpush1.msra.mxu0 0.0
    %118 = vmatprep.subr.mxu0 0.0
    %119 = vmatpush1.msra.mxu0 0.0
    %120 = vmatprep.subr.mxu0 0.0
    %121 = vmatpush1.msra.mxu0 0.0
    %122 = vmatprep.subr.mxu0 0.0
    %123 = vmatpush1.msra.mxu0 0.0
    %124 = vmatprep.subr.mxu0 0.0
    %125 = vmatpush1.msra.mxu0 0.0
    %126 = vmatprep.subr.mxu0 0.0
    %127 = vmatpush1.msra.mxu0 0.0
    %128 = vmatprep.subr.mxu0 0.0
    %129 = vmatpush1.msra.mxu0 0.0
    %130 = vmatprep.subr.mxu0 0.0
    %131 = vmatpush1.msra.mxu0 0.0
    %132 = vmatprep.subr.mxu0 0.0
    %133 = vmatpush1.msra.mxu0 0.0
    %134 = vmatprep.subr.mxu0 0.0
    %135 = vmatpush1.msra.mxu0 0.0
    %136 = vmatprep.subr.mxu0 0.0
    %137 = vmatpush1.msra.mxu0 0.0
    %138 = vmatprep.subr.mxu0 0.0
    %139 = vmatpush1.msra.mxu0 0.0
    %140 = vmatprep.subr.mxu0 0.0
    %141 = vmatpush1.msra.mxu0 0.0
    %142 = vmatprep.subr.mxu0 0.0
    %143 = vmatpush1.msra.mxu0 0.0
    %144 = vmatprep.subr.mxu0 0.0
    %145 = vmatpush1.msra.mxu0 0.0
    %146 = vmatprep.subr.mxu0 0.0
    %147 = vmatpush1.msra.mxu0 0.0
    %148 = vmatprep.mubr.f32.mxu0 0.0
    %149 = vmatmul.mubr.f32.gmra.mrb[0].mxu0 %v58
    %v150 = vpop.f32.mrb[0].mxu0
    %v151 = vadd.f32 %v82, %v150
    %v152 = vpop.f32.mrb[0].mxu0
    %153 = vdwg.mxu0
    %v154 = vtanh.pop %v151
    %s155 = scalar_lea.vmem [#allocation2], 256
    %v156 = vld [vmem:[%s155] sm:$0xff]
    %v157 = vld [vmem:[%s155 + $0x8] sm:$0xff]
    %v158 = vld [vmem:[%s155 + $0x10] sm:$0xff]
    %v159 = vld [vmem:[%s155 + $0x18] sm:$0xff]
    %v160 = vld [vmem:[%s155 + $0x20] sm:$0xff]
    %v161 = vld [vmem:[%s155 + $0x28] sm:$0xff]
    %v162 = vld [vmem:[%s155 + $0x30] sm:$0xff]
    %v163 = vld [vmem:[%s155 + $0x38] sm:$0xff]
    %v164 = vld [vmem:[%s155 + $0x40] sm:$0xff]
    %v165 = vld [vmem:[%s155 + $0x48] sm:$0xff]
    %v166 = vld [vmem:[%s155 + $0x50] sm:$0xff]
    %v167 = vld [vmem:[%s155 + $0x58] sm:$0xff]
    %v168 = vld [vmem:[%s155 + $0x60] sm:$0xff]
    %v169 = vld [vmem:[%s155 + $0x68] sm:$0xff]
    %v170 = vld [vmem:[%s155 + $0x70] sm:$0xff]
    %v171 = vld [vmem:[%s155 + $0x78] sm:$0xff]
    %s172 = scalar_lea.vmem %s2, 2
    %v173 = vld [vmem:[%s172] sm:$0x1]
    %v175 = vlaneseq
    %v176 = vshrl.u32 %v175, 7
    %v177 = vsub.s32 0, %v176
    %v178 = vrot.slane %v173, %v177
    %180 = vmatprep.subr.mxu0 0.0
    %181 = vmatpush1.msra.mxu0 %v156
    %182 = vmatprep.subr.mxu0 0.0
    %183 = vmatpush1.msra.mxu0 %v157
    %184 = vmatprep.subr.mxu0 0.0
    %185 = vmatpush1.msra.mxu0 %v158
    %186 = vmatprep.subr.mxu0 0.0
    %187 = vmatpush1.msra.mxu0 %v159
    %188 = vmatprep.subr.mxu0 0.0
    %189 = vmatpush1.msra.mxu0 %v160
    %190 = vmatprep.subr.mxu0 0.0
    %191 = vmatpush1.msra.mxu0 %v161
    %192 = vmatprep.subr.mxu0 0.0
    %193 = vmatpush1.msra.mxu0 %v162
    %194 = vmatprep.subr.mxu0 0.0
    %195 = vmatpush1.msra.mxu0 %v163
    %196 = vmatprep.subr.mxu0 0.0
    %197 = vmatpush1.msra.mxu0 %v164
    %198 = vmatprep.subr.mxu0 0.0
    %199 = vmatpush1.msra.mxu0 %v165
    %200 = vmatprep.subr.mxu0 0.0
    %201 = vmatpush1.msra.mxu0 %v166
    %202 = vmatprep.subr.mxu0 0.0
    %203 = vmatpush1.msra.mxu0 %v167
    %204 = vmatprep.subr.mxu0 0.0
    %205 = vmatpush1.msra.mxu0 %v168
    %206 = vmatprep.subr.mxu0 0.0
    %207 = vmatpush1.msra.mxu0 %v169
    %208 = vmatprep.subr.mxu0 0.0
    %209 = vmatpush1.msra.mxu0 %v170
    %210 = vmatprep.subr.mxu0 0.0
    %211 = vmatpush1.msra.mxu0 %v171
    %212 = vmatprep.subr.mxu0 0.0
    %213 = vmatpush1.msra.mxu0 0.0
    %214 = vmatprep.subr.mxu0 0.0
    %215 = vmatpush1.msra.mxu0 0.0
    %216 = vmatprep.subr.mxu0 0.0
    %217 = vmatpush1.msra.mxu0 0.0
    %218 = vmatprep.subr.mxu0 0.0
    %219 = vmatpush1.msra.mxu0 0.0
    %220 = vmatprep.subr.mxu0 0.0
    %221 = vmatpush1.msra.mxu0 0.0
    %222 = vmatprep.subr.mxu0 0.0
    %223 = vmatpush1.msra.mxu0 0.0
    %224 = vmatprep.subr.mxu0 0.0
    %225 = vmatpush1.msra.mxu0 0.0
    %226 = vmatprep.subr.mxu0 0.0
    %227 = vmatpush1.msra.mxu0 0.0
    %228 = vmatprep.subr.mxu0 0.0
    %229 = vmatpush1.msra.mxu0 0.0
    %230 = vmatprep.subr.mxu0 0.0
    %231 = vmatpush1.msra.mxu0 0.0
    %232 = vmatprep.subr.mxu0 0.0
    %233 = vmatpush1.msra.mxu0 0.0
    %234 = vmatprep.subr.mxu0 0.0
    %235 = vmatpush1.msra.mxu0 0.0
    %236 = vmatprep.subr.mxu0 0.0
    %237 = vmatpush1.msra.mxu0 0.0
    %238 = vmatprep.subr.mxu0 0.0
    %239 = vmatpush1.msra.mxu0 0.0
    %240 = vmatprep.subr.mxu0 0.0
    %241 = vmatpush1.msra.mxu0 0.0
    %242 = vmatprep.subr.mxu0 0.0
    %243 = vmatpush1.msra.mxu0 0.0
    %244 = vmatprep.mubr.f32.mxu0 0.0
    %245 = vmatmul.mubr.f32.gmra.mrb[0].mxu0 %v154
    %v246 = vpop.f32.mrb[0].mxu0
    %v247 = vadd.f32 %v178, %v246
    %v248 = vpop.f32.mrb[0].mxu0
    %249 = vdwg.mxu0
    %v250 = vtanh.pop %v247
    %s251 = scalar_lea.vmem [#allocation2], 384
    %v252 = vld [vmem:[%s251] sm:$0xff]
    %v253 = vld [vmem:[%s251 + $0x8] sm:$0xff]
    %v254 = vld [vmem:[%s251 + $0x10] sm:$0xff]
    %v255 = vld [vmem:[%s251 + $0x18] sm:$0xff]
    %v256 = vld [vmem:[%s251 + $0x20] sm:$0xff]
    %v257 = vld [vmem:[%s251 + $0x28] sm:$0xff]
    %v258 = vld [vmem:[%s251 + $0x30] sm:$0xff]
    %v259 = vld [vmem:[%s251 + $0x38] sm:$0xff]
    %v260 = vld [vmem:[%s251 + $0x40] sm:$0xff]
    %v261 = vld [vmem:[%s251 + $0x48] sm:$0xff]
    %v262 = vld [vmem:[%s251 + $0x50] sm:$0xff]
    %v263 = vld [vmem:[%s251 + $0x58] sm:$0xff]
    %v264 = vld [vmem:[%s251 + $0x60] sm:$0xff]
    %v265 = vld [vmem:[%s251 + $0x68] sm:$0xff]
    %v266 = vld [vmem:[%s251 + $0x70] sm:$0xff]
    %v267 = vld [vmem:[%s251 + $0x78] sm:$0xff]
    %s268 = scalar_lea.vmem %s2, 3
    %v269 = vld [vmem:[%s268] sm:$0x1]
    %v271 = vlaneseq
    %v272 = vshrl.u32 %v271, 7
    %v273 = vsub.s32 0, %v272
    %v274 = vrot.slane %v269, %v273
    %276 = vmatprep.subr.mxu0 0.0
    %277 = vmatpush1.msra.mxu0 %v252
    %278 = vmatprep.subr.mxu0 0.0
    %279 = vmatpush1.msra.mxu0 %v253
    %280 = vmatprep.subr.mxu0 0.0
    %281 = vmatpush1.msra.mxu0 %v254
    %282 = vmatprep.subr.mxu0 0.0
    %283 = vmatpush1.msra.mxu0 %v255
    %284 = vmatprep.subr.mxu0 0.0
    %285 = vmatpush1.msra.mxu0 %v256
    %286 = vmatprep.subr.mxu0 0.0
    %287 = vmatpush1.msra.mxu0 %v257
    %288 = vmatprep.subr.mxu0 0.0
    %289 = vmatpush1.msra.mxu0 %v258
    %290 = vmatprep.subr.mxu0 0.0
    %291 = vmatpush1.msra.mxu0 %v259
    %292 = vmatprep.subr.mxu0 0.0
    %293 = vmatpush1.msra.mxu0 %v260
    %294 = vmatprep.subr.mxu0 0.0
    %295 = vmatpush1.msra.mxu0 %v261
    %296 = vmatprep.subr.mxu0 0.0
    %297 = vmatpush1.msra.mxu0 %v262
    %298 = vmatprep.subr.mxu0 0.0
    %299 = vmatpush1.msra.mxu0 %v263
    %300 = vmatprep.subr.mxu0 0.0
    %301 = vmatpush1.msra.mxu0 %v264
    %302 = vmatprep.subr.mxu0 0.0
    %303 = vmatpush1.msra.mxu0 %v265
    %304 = vmatprep.subr.mxu0 0.0
    %305 = vmatpush1.msra.mxu0 %v266
    %306 = vmatprep.subr.mxu0 0.0
    %307 = vmatpush1.msra.mxu0 %v267
    %308 = vmatprep.subr.mxu0 0.0
    %309 = vmatpush1.msra.mxu0 0.0
    %310 = vmatprep.subr.mxu0 0.0
    %311 = vmatpush1.msra.mxu0 0.0
    %312 = vmatprep.subr.mxu0 0.0
    %313 = vmatpush1.msra.mxu0 0.0
    %314 = vmatprep.subr.mxu0 0.0
    %315 = vmatpush1.msra.mxu0 0.0
    %316 = vmatprep.subr.mxu0 0.0
    %317 = vmatpush1.msra.mxu0 0.0
    %318 = vmatprep.subr.mxu0 0.0
    %319 = vmatpush1.msra.mxu0 0.0
    %320 = vmatprep.subr.mxu0 0.0
    %321 = vmatpush1.msra.mxu0 0.0
    %322 = vmatprep.subr.mxu0 0.0
    %323 = vmatpush1.msra.mxu0 0.0
    %324 = vmatprep.subr.mxu0 0.0
    %325 = vmatpush1.msra.mxu0 0.0
    %326 = vmatprep.subr.mxu0 0.0
    %327 = vmatpush1.msra.mxu0 0.0
    %328 = vmatprep.subr.mxu0 0.0
    %329 = vmatpush1.msra.mxu0 0.0
    %330 = vmatprep.subr.mxu0 0.0
    %331 = vmatpush1.msra.mxu0 0.0
    %332 = vmatprep.subr.mxu0 0.0
    %333 = vmatpush1.msra.mxu0 0.0
    %334 = vmatprep.subr.mxu0 0.0
    %335 = vmatpush1.msra.mxu0 0.0
    %336 = vmatprep.subr.mxu0 0.0
    %337 = vmatpush1.msra.mxu0 0.0
    %338 = vmatprep.subr.mxu0 0.0
    %339 = vmatpush1.msra.mxu0 0.0
    %340 = vmatprep.mubr.f32.mxu0 0.0
    %341 = vmatmul.mubr.f32.gmra.mrb[0].mxu0 %v250
    %v342 = vpop.f32.mrb[0].mxu0
    %v343 = vadd.f32 %v274, %v342
    %v344 = vpop.f32.mrb[0].mxu0
    %345 = vdwg.mxu0
    %v346 = vtanh.pop %v343
    %s347 = scalar_lea.vmem [#allocation2], 512
    %v348 = vld [vmem:[%s347] sm:$0xff]
    %v349 = vld [vmem:[%s347 + $0x8] sm:$0xff]
    %v350 = vld [vmem:[%s347 + $0x10] sm:$0xff]
    %v351 = vld [vmem:[%s347 + $0x18] sm:$0xff]
    %v352 = vld [vmem:[%s347 + $0x20] sm:$0xff]
    %v353 = vld [vmem:[%s347 + $0x28] sm:$0xff]
    %v354 = vld [vmem:[%s347 + $0x30] sm:$0xff]
    %v355 = vld [vmem:[%s347 + $0x38] sm:$0xff]
    %v356 = vld [vmem:[%s347 + $0x40] sm:$0xff]
    %v357 = vld [vmem:[%s347 + $0x48] sm:$0xff]
    %v358 = vld [vmem:[%s347 + $0x50] sm:$0xff]
    %v359 = vld [vmem:[%s347 + $0x58] sm:$0xff]
    %v360 = vld [vmem:[%s347 + $0x60] sm:$0xff]
    %v361 = vld [vmem:[%s347 + $0x68] sm:$0xff]
    %v362 = vld [vmem:[%s347 + $0x70] sm:$0xff]
    %v363 = vld [vmem:[%s347 + $0x78] sm:$0xff]
    %s364 = scalar_lea.vmem %s2, 4
    %v365 = vld [vmem:[%s364] sm:$0x1]
    %v367 = vlaneseq
    %v368 = vshrl.u32 %v367, 7
    %v369 = vsub.s32 0, %v368
    %v370 = vrot.slane %v365, %v369
    %372 = vmatprep.subr.mxu0 0.0
    %373 = vmatpush1.msra.mxu0 %v348
    %374 = vmatprep.subr.mxu0 0.0
    %375 = vmatpush1.msra.mxu0 %v349
    %376 = vmatprep.subr.mxu0 0.0
    %377 = vmatpush1.msra.mxu0 %v350
    %378 = vmatprep.subr.mxu0 0.0
    %379 = vmatpush1.msra.mxu0 %v351
    %380 = vmatprep.subr.mxu0 0.0
    %381 = vmatpush1.msra.mxu0 %v352
    %382 = vmatprep.subr.mxu0 0.0
    %383 = vmatpush1.msra.mxu0 %v353
    %384 = vmatprep.subr.mxu0 0.0
    %385 = vmatpush1.msra.mxu0 %v354
    %386 = vmatprep.subr.mxu0 0.0
    %387 = vmatpush1.msra.mxu0 %v355
    %388 = vmatprep.subr.mxu0 0.0
    %389 = vmatpush1.msra.mxu0 %v356
    %390 = vmatprep.subr.mxu0 0.0
    %391 = vmatpush1.msra.mxu0 %v357
    %392 = vmatprep.subr.mxu0 0.0
    %393 = vmatpush1.msra.mxu0 %v358
    %394 = vmatprep.subr.mxu0 0.0
    %395 = vmatpush1.msra.mxu0 %v359
    %396 = vmatprep.subr.mxu0 0.0
    %397 = vmatpush1.msra.mxu0 %v360
    %398 = vmatprep.subr.mxu0 0.0
    %399 = vmatpush1.msra.mxu0 %v361
    %400 = vmatprep.subr.mxu0 0.0
    %401 = vmatpush1.msra.mxu0 %v362
    %402 = vmatprep.subr.mxu0 0.0
    %403 = vmatpush1.msra.mxu0 %v363
    %404 = vmatprep.subr.mxu0 0.0
    %405 = vmatpush1.msra.mxu0 0.0
    %406 = vmatprep.subr.mxu0 0.0
    %407 = vmatpush1.msra.mxu0 0.0
    %408 = vmatprep.subr.mxu0 0.0
    %409 = vmatpush1.msra.mxu0 0.0
    %410 = vmatprep.subr.mxu0 0.0
    %411 = vmatpush1.msra.mxu0 0.0
    %412 = vmatprep.subr.mxu0 0.0
    %413 = vmatpush1.msra.mxu0 0.0
    %414 = vmatprep.subr.mxu0 0.0
    %415 = vmatpush1.msra.mxu0 0.0
    %416 = vmatprep.subr.mxu0 0.0
    %417 = vmatpush1.msra.mxu0 0.0
    %418 = vmatprep.subr.mxu0 0.0
    %419 = vmatpush1.msra.mxu0 0.0
    %420 = vmatprep.subr.mxu0 0.0
    %421 = vmatpush1.msra.mxu0 0.0
    %422 = vmatprep.subr.mxu0 0.0
    %423 = vmatpush1.msra.mxu0 0.0
    %424 = vmatprep.subr.mxu0 0.0
    %425 = vmatpush1.msra.mxu0 0.0
    %426 = vmatprep.subr.mxu0 0.0
    %427 = vmatpush1.msra.mxu0 0.0
    %428 = vmatprep.subr.mxu0 0.0
    %429 = vmatpush1.msra.mxu0 0.0
    %430 = vmatprep.subr.mxu0 0.0
    %431 = vmatpush1.msra.mxu0 0.0
    %432 = vmatprep.subr.mxu0 0.0
    %433 = vmatpush1.msra.mxu0 0.0
    %434 = vmatprep.subr.mxu0 0.0
    %435 = vmatpush1.msra.mxu0 0.0
    %436 = vmatprep.mubr.f32.mxu0 0.0
    %437 = vmatmul.mubr.f32.gmra.mrb[0].mxu0 %v346
    %v438 = vpop.f32.mrb[0].mxu0
    %v439 = vadd.f32 %v370, %v438
    %v440 = vpop.f32.mrb[0].mxu0
    %441 = vdwg.mxu0
    %v442 = vtanh.pop %v439
    %s443 = scalar_lea.vmem [#allocation2], 640
    %v444 = vld [vmem:[%s443] sm:$0xff]
    %v445 = vld [vmem:[%s443 + $0x8] sm:$0xff]
    %v446 = vld [vmem:[%s443 + $0x10] sm:$0xff]
    %v447 = vld [vmem:[%s443 + $0x18] sm:$0xff]
    %v448 = vld [vmem:[%s443 + $0x20] sm:$0xff]
    %v449 = vld [vmem:[%s443 + $0x28] sm:$0xff]
    %v450 = vld [vmem:[%s443 + $0x30] sm:$0xff]
    %v451 = vld [vmem:[%s443 + $0x38] sm:$0xff]
    %v452 = vld [vmem:[%s443 + $0x40] sm:$0xff]
    %v453 = vld [vmem:[%s443 + $0x48] sm:$0xff]
    %v454 = vld [vmem:[%s443 + $0x50] sm:$0xff]
    %v455 = vld [vmem:[%s443 + $0x58] sm:$0xff]
    %v456 = vld [vmem:[%s443 + $0x60] sm:$0xff]
    %v457 = vld [vmem:[%s443 + $0x68] sm:$0xff]
    %v458 = vld [vmem:[%s443 + $0x70] sm:$0xff]
    %v459 = vld [vmem:[%s443 + $0x78] sm:$0xff]
    %s460 = scalar_lea.vmem %s2, 5
    %v461 = vld [vmem:[%s460] sm:$0x1]
    %v463 = vlaneseq
    %v464 = vshrl.u32 %v463, 7
    %v465 = vsub.s32 0, %v464
    %v466 = vrot.slane %v461, %v465
    %468 = vmatprep.subr.mxu0 0.0
    %469 = vmatpush1.msra.mxu0 %v444
    %470 = vmatprep.subr.mxu0 0.0
    %471 = vmatpush1.msra.mxu0 %v445
    %472 = vmatprep.subr.mxu0 0.0
    %473 = vmatpush1.msra.mxu0 %v446
    %474 = vmatprep.subr.mxu0 0.0
    %475 = vmatpush1.msra.mxu0 %v447
    %476 = vmatprep.subr.mxu0 0.0
    %477 = vmatpush1.msra.mxu0 %v448
    %478 = vmatprep.subr.mxu0 0.0
    %479 = vmatpush1.msra.mxu0 %v449
    %480 = vmatprep.subr.mxu0 0.0
    %481 = vmatpush1.msra.mxu0 %v450
    %482 = vmatprep.subr.mxu0 0.0
    %483 = vmatpush1.msra.mxu0 %v451
    %484 = vmatprep.subr.mxu0 0.0
    %485 = vmatpush1.msra.mxu0 %v452
    %486 = vmatprep.subr.mxu0 0.0
    %487 = vmatpush1.msra.mxu0 %v453
    %488 = vmatprep.subr.mxu0 0.0
    %489 = vmatpush1.msra.mxu0 %v454
    %490 = vmatprep.subr.mxu0 0.0
    %491 = vmatpush1.msra.mxu0 %v455
    %492 = vmatprep.subr.mxu0 0.0
    %493 = vmatpush1.msra.mxu0 %v456
    %494 = vmatprep.subr.mxu0 0.0
    %495 = vmatpush1.msra.mxu0 %v457
    %496 = vmatprep.subr.mxu0 0.0
    %497 = vmatpush1.msra.mxu0 %v458
    %498 = vmatprep.subr.mxu0 0.0
    %499 = vmatpush1.msra.mxu0 %v459
    %500 = vmatprep.subr.mxu0 0.0
    %501 = vmatpush1.msra.mxu0 0.0
    %502 = vmatprep.subr.mxu0 0.0
    %503 = vmatpush1.msra.mxu0 0.0
    %504 = vmatprep.subr.mxu0 0.0
    %505 = vmatpush1.msra.mxu0 0.0
    %506 = vmatprep.subr.mxu0 0.0
    %507 = vmatpush1.msra.mxu0 0.0
    %508 = vmatprep.subr.mxu0 0.0
    %509 = vmatpush1.msra.mxu0 0.0
    %510 = vmatprep.subr.mxu0 0.0
    %511 = vmatpush1.msra.mxu0 0.0
    %512 = vmatprep.subr.mxu0 0.0
    %513 = vmatpush1.msra.mxu0 0.0
    %514 = vmatprep.subr.mxu0 0.0
    %515 = vmatpush1.msra.mxu0 0.0
    %516 = vmatprep.subr.mxu0 0.0
    %517 = vmatpush1.msra.mxu0 0.0
    %518 = vmatprep.subr.mxu0 0.0
    %519 = vmatpush1.msra.mxu0 0.0
    %520 = vmatprep.subr.mxu0 0.0
    %521 = vmatpush1.msra.mxu0 0.0
    %522 = vmatprep.subr.mxu0 0.0
    %523 = vmatpush1.msra.mxu0 0.0
    %524 = vmatprep.subr.mxu0 0.0
    %525 = vmatpush1.msra.mxu0 0.0
    %526 = vmatprep.subr.mxu0 0.0
    %527 = vmatpush1.msra.mxu0 0.0
    %528 = vmatprep.subr.mxu0 0.0
    %529 = vmatpush1.msra.mxu0 0.0
    %530 = vmatprep.subr.mxu0 0.0
    %531 = vmatpush1.msra.mxu0 0.0
    %532 = vmatprep.mubr.f32.mxu0 0.0
    %533 = vmatmul.mubr.f32.gmra.mrb[0].mxu0 %v442
    %v534 = vpop.f32.mrb[0].mxu0
    %v535 = vadd.f32 %v466, %v534
    %v536 = vpop.f32.mrb[0].mxu0
    %537 = vdwg.mxu0
    %v538 = vtanh.pop %v535
    %s539 = scalar_lea.vmem [#allocation2], 768
    %v540 = vld [vmem:[%s539] sm:$0xff]
    %v541 = vld [vmem:[%s539 + $0x8] sm:$0xff]
    %v542 = vld [vmem:[%s539 + $0x10] sm:$0xff]
    %v543 = vld [vmem:[%s539 + $0x18] sm:$0xff]
    %v544 = vld [vmem:[%s539 + $0x20] sm:$0xff]
    %v545 = vld [vmem:[%s539 + $0x28] sm:$0xff]
    %v546 = vld [vmem:[%s539 + $0x30] sm:$0xff]
    %v547 = vld [vmem:[%s539 + $0x38] sm:$0xff]
    %v548 = vld [vmem:[%s539 + $0x40] sm:$0xff]
    %v549 = vld [vmem:[%s539 + $0x48] sm:$0xff]
    %v550 = vld [vmem:[%s539 + $0x50] sm:$0xff]
    %v551 = vld [vmem:[%s539 + $0x58] sm:$0xff]
    %v552 = vld [vmem:[%s539 + $0x60] sm:$0xff]
    %v553 = vld [vmem:[%s539 + $0x68] sm:$0xff]
    %v554 = vld [vmem:[%s539 + $0x70] sm:$0xff]
    %v555 = vld [vmem:[%s539 + $0x78] sm:$0xff]
    %s556 = scalar_lea.vmem %s2, 6
    %v557 = vld [vmem:[%s556] sm:$0x1]
    %v559 = vlaneseq
    %v560 = vshrl.u32 %v559, 7
    %v561 = vsub.s32 0, %v560
    %v562 = vrot.slane %v557, %v561
    %564 = vmatprep.subr.mxu0 0.0
    %565 = vmatpush1.msra.mxu0 %v540
    %566 = vmatprep.subr.mxu0 0.0
    %567 = vmatpush1.msra.mxu0 %v541
    %568 = vmatprep.subr.mxu0 0.0
    %569 = vmatpush1.msra.mxu0 %v542
    %570 = vmatprep.subr.mxu0 0.0
    %571 = vmatpush1.msra.mxu0 %v543
    %572 = vmatprep.subr.mxu0 0.0
    %573 = vmatpush1.msra.mxu0 %v544
    %574 = vmatprep.subr.mxu0 0.0
    %575 = vmatpush1.msra.mxu0 %v545
    %576 = vmatprep.subr.mxu0 0.0
    %577 = vmatpush1.msra.mxu0 %v546
    %578 = vmatprep.subr.mxu0 0.0
    %579 = vmatpush1.msra.mxu0 %v547
    %580 = vmatprep.subr.mxu0 0.0
    %581 = vmatpush1.msra.mxu0 %v548
    %582 = vmatprep.subr.mxu0 0.0
    %583 = vmatpush1.msra.mxu0 %v549
    %584 = vmatprep.subr.mxu0 0.0
    %585 = vmatpush1.msra.mxu0 %v550
    %586 = vmatprep.subr.mxu0 0.0
    %587 = vmatpush1.msra.mxu0 %v551
    %588 = vmatprep.subr.mxu0 0.0
    %589 = vmatpush1.msra.mxu0 %v552
    %590 = vmatprep.subr.mxu0 0.0
    %591 = vmatpush1.msra.mxu0 %v553
    %592 = vmatprep.subr.mxu0 0.0
    %593 = vmatpush1.msra.mxu0 %v554
    %594 = vmatprep.subr.mxu0 0.0
    %595 = vmatpush1.msra.mxu0 %v555
    %596 = vmatprep.subr.mxu0 0.0
    %597 = vmatpush1.msra.mxu0 0.0
    %598 = vmatprep.subr.mxu0 0.0
    %599 = vmatpush1.msra.mxu0 0.0
    %600 = vmatprep.subr.mxu0 0.0
    %601 = vmatpush1.msra.mxu0 0.0
    %602 = vmatprep.subr.mxu0 0.0
    %603 = vmatpush1.msra.mxu0 0.0
    %604 = vmatprep.subr.mxu0 0.0
    %605 = vmatpush1.msra.mxu0 0.0
    %606 = vmatprep.subr.mxu0 0.0
    %607 = vmatpush1.msra.mxu0 0.0
    %608 = vmatprep.subr.mxu0 0.0
    %609 = vmatpush1.msra.mxu0 0.0
    %610 = vmatprep.subr.mxu0 0.0
    %611 = vmatpush1.msra.mxu0 0.0
    %612 = vmatprep.subr.mxu0 0.0
    %613 = vmatpush1.msra.mxu0 0.0
    %614 = vmatprep.subr.mxu0 0.0
    %615 = vmatpush1.msra.mxu0 0.0
    %616 = vmatprep.subr.mxu0 0.0
    %617 = vmatpush1.msra.mxu0 0.0
    %618 = vmatprep.subr.mxu0 0.0
    %619 = vmatpush1.msra.mxu0 0.0
    %620 = vmatprep.subr.mxu0 0.0
    %621 = vmatpush1.msra.mxu0 0.0
    %622 = vmatprep.subr.mxu0 0.0
    %623 = vmatpush1.msra.mxu0 0.0
    %624 = vmatprep.subr.mxu0 0.0
    %625 = vmatpush1.msra.mxu0 0.0
    %626 = vmatprep.subr.mxu0 0.0
    %627 = vmatpush1.msra.mxu0 0.0
    %628 = vmatprep.mubr.f32.mxu0 0.0
    %629 = vmatmul.mubr.f32.gmra.mrb[0].mxu0 %v538
    %v630 = vpop.f32.mrb[0].mxu0
    %v631 = vadd.f32 %v562, %v630
    %v632 = vpop.f32.mrb[0].mxu0
    %633 = vdwg.mxu0
    %v634 = vtanh.pop %v631
    %s635 = scalar_lea.vmem [#allocation2], 896
    %v636 = vld [vmem:[%s635] sm:$0xff]
    %v637 = vld [vmem:[%s635 + $0x8] sm:$0xff]
    %v638 = vld [vmem:[%s635 + $0x10] sm:$0xff]
    %v639 = vld [vmem:[%s635 + $0x18] sm:$0xff]
    %v640 = vld [vmem:[%s635 + $0x20] sm:$0xff]
    %v641 = vld [vmem:[%s635 + $0x28] sm:$0xff]
    %v642 = vld [vmem:[%s635 + $0x30] sm:$0xff]
    %v643 = vld [vmem:[%s635 + $0x38] sm:$0xff]
    %v644 = vld [vmem:[%s635 + $0x40] sm:$0xff]
    %v645 = vld [vmem:[%s635 + $0x48] sm:$0xff]
    %v646 = vld [vmem:[%s635 + $0x50] sm:$0xff]
    %v647 = vld [vmem:[%s635 + $0x58] sm:$0xff]
    %v648 = vld [vmem:[%s635 + $0x60] sm:$0xff]
    %v649 = vld [vmem:[%s635 + $0x68] sm:$0xff]
    %v650 = vld [vmem:[%s635 + $0x70] sm:$0xff]
    %v651 = vld [vmem:[%s635 + $0x78] sm:$0xff]
    %s652 = scalar_lea.vmem %s2, 7
    %v653 = vld [vmem:[%s652] sm:$0x1]
    %v655 = vlaneseq
    %v656 = vshrl.u32 %v655, 7
    %v657 = vsub.s32 0, %v656
    %v658 = vrot.slane %v653, %v657
    %660 = vmatprep.subr.mxu0 0.0
    %661 = vmatpush1.msra.mxu0 %v636
    %662 = vmatprep.subr.mxu0 0.0
    %663 = vmatpush1.msra.mxu0 %v637
    %664 = vmatprep.subr.mxu0 0.0
    %665 = vmatpush1.msra.mxu0 %v638
    %666 = vmatprep.subr.mxu0 0.0
    %667 = vmatpush1.msra.mxu0 %v639
    %668 = vmatprep.subr.mxu0 0.0
    %669 = vmatpush1.msra.mxu0 %v640
    %670 = vmatprep.subr.mxu0 0.0
    %671 = vmatpush1.msra.mxu0 %v641
    %672 = vmatprep.subr.mxu0 0.0
    %673 = vmatpush1.msra.mxu0 %v642
    %674 = vmatprep.subr.mxu0 0.0
    %675 = vmatpush1.msra.mxu0 %v643
    %676 = vmatprep.subr.mxu0 0.0
    %677 = vmatpush1.msra.mxu0 %v644
    %678 = vmatprep.subr.mxu0 0.0
    %679 = vmatpush1.msra.mxu0 %v645
    %680 = vmatprep.subr.mxu0 0.0
    %681 = vmatpush1.msra.mxu0 %v646
    %682 = vmatprep.subr.mxu0 0.0
    %683 = vmatpush1.msra.mxu0 %v647
    %684 = vmatprep.subr.mxu0 0.0
    %685 = vmatpush1.msra.mxu0 %v648
    %686 = vmatprep.subr.mxu0 0.0
    %687 = vmatpush1.msra.mxu0 %v649
    %688 = vmatprep.subr.mxu0 0.0
    %689 = vmatpush1.msra.mxu0 %v650
    %690 = vmatprep.subr.mxu0 0.0
    %691 = vmatpush1.msra.mxu0 %v651
    %692 = vmatprep.subr.mxu0 0.0
    %693 = vmatpush1.msra.mxu0 0.0
    %694 = vmatprep.subr.mxu0 0.0
    %695 = vmatpush1.msra.mxu0 0.0
    %696 = vmatprep.subr.mxu0 0.0
    %697 = vmatpush1.msra.mxu0 0.0
    %698 = vmatprep.subr.mxu0 0.0
    %699 = vmatpush1.msra.mxu0 0.0
    %700 = vmatprep.subr.mxu0 0.0
    %701 = vmatpush1.msra.mxu0 0.0
    %702 = vmatprep.subr.mxu0 0.0
    %703 = vmatpush1.msra.mxu0 0.0
    %704 = vmatprep.subr.mxu0 0.0
    %705 = vmatpush1.msra.mxu0 0.0
    %706 = vmatprep.subr.mxu0 0.0
    %707 = vmatpush1.msra.mxu0 0.0
    %708 = vmatprep.subr.mxu0 0.0
    %709 = vmatpush1.msra.mxu0 0.0
    %710 = vmatprep.subr.mxu0 0.0
    %711 = vmatpush1.msra.mxu0 0.0
    %712 = vmatprep.subr.mxu0 0.0
    %713 = vmatpush1.msra.mxu0 0.0
    %714 = vmatprep.subr.mxu0 0.0
    %715 = vmatpush1.msra.mxu0 0.0
    %716 = vmatprep.subr.mxu0 0.0
    %717 = vmatpush1.msra.mxu0 0.0
    %718 = vmatprep.subr.mxu0 0.0
    %719 = vmatpush1.msra.mxu0 0.0
    %720 = vmatprep.subr.mxu0 0.0
    %721 = vmatpush1.msra.mxu0 0.0
    %722 = vmatprep.subr.mxu0 0.0
    %723 = vmatpush1.msra.mxu0 0.0
    %724 = vmatprep.mubr.f32.mxu0 0.0
    %725 = vmatmul.mubr.f32.gmra.mrb[0].mxu0 %v634
    %v726 = vpop.f32.mrb[0].mxu0
    %v727 = vadd.f32 %v658, %v726
    %v728 = vpop.f32.mrb[0].mxu0
    %729 = vdwg.mxu0
    %v730 = vtanh.pop %v727
    %s731 = scalar_lea.vmem [#allocation2], 1024
    %v732 = vld [vmem:[%s731] sm:$0xff]
    %v733 = vld [vmem:[%s731 + $0x8] sm:$0xff]
    %v734 = vld [vmem:[%s731 + $0x10] sm:$0xff]
    %v735 = vld [vmem:[%s731 + $0x18] sm:$0xff]
    %v736 = vld [vmem:[%s731 + $0x20] sm:$0xff]
    %v737 = vld [vmem:[%s731 + $0x28] sm:$0xff]
    %v738 = vld [vmem:[%s731 + $0x30] sm:$0xff]
    %v739 = vld [vmem:[%s731 + $0x38] sm:$0xff]
    %v740 = vld [vmem:[%s731 + $0x40] sm:$0xff]
    %v741 = vld [vmem:[%s731 + $0x48] sm:$0xff]
    %v742 = vld [vmem:[%s731 + $0x50] sm:$0xff]
    %v743 = vld [vmem:[%s731 + $0x58] sm:$0xff]
    %v744 = vld [vmem:[%s731 + $0x60] sm:$0xff]
    %v745 = vld [vmem:[%s731 + $0x68] sm:$0xff]
    %v746 = vld [vmem:[%s731 + $0x70] sm:$0xff]
    %v747 = vld [vmem:[%s731 + $0x78] sm:$0xff]
    %s748 = scalar_lea.vmem %s2, 8
    %v749 = vld [vmem:[%s748] sm:$0x1]
    %v751 = vlaneseq
    %v752 = vshrl.u32 %v751, 7
    %v753 = vsub.s32 0, %v752
    %v754 = vrot.slane %v749, %v753
    %756 = vmatprep.subr.mxu0 0.0
    %757 = vmatpush1.msra.mxu0 %v732
    %758 = vmatprep.subr.mxu0 0.0
    %759 = vmatpush1.msra.mxu0 %v733
    %760 = vmatprep.subr.mxu0 0.0
    %761 = vmatpush1.msra.mxu0 %v734
    %762 = vmatprep.subr.mxu0 0.0
    %763 = vmatpush1.msra.mxu0 %v735
    %764 = vmatprep.subr.mxu0 0.0
    %765 = vmatpush1.msra.mxu0 %v736
    %766 = vmatprep.subr.mxu0 0.0
    %767 = vmatpush1.msra.mxu0 %v737
    %768 = vmatprep.subr.mxu0 0.0
    %769 = vmatpush1.msra.mxu0 %v738
    %770 = vmatprep.subr.mxu0 0.0
    %771 = vmatpush1.msra.mxu0 %v739
    %772 = vmatprep.subr.mxu0 0.0
    %773 = vmatpush1.msra.mxu0 %v740
    %774 = vmatprep.subr.mxu0 0.0
    %775 = vmatpush1.msra.mxu0 %v741
    %776 = vmatprep.subr.mxu0 0.0
    %777 = vmatpush1.msra.mxu0 %v742
    %778 = vmatprep.subr.mxu0 0.0
    %779 = vmatpush1.msra.mxu0 %v743
    %780 = vmatprep.subr.mxu0 0.0
    %781 = vmatpush1.msra.mxu0 %v744
    %782 = vmatprep.subr.mxu0 0.0
    %783 = vmatpush1.msra.mxu0 %v745
    %784 = vmatprep.subr.mxu0 0.0
    %785 = vmatpush1.msra.mxu0 %v746
    %786 = vmatprep.subr.mxu0 0.0
    %787 = vmatpush1.msra.mxu0 %v747
    %788 = vmatprep.subr.mxu0 0.0
    %789 = vmatpush1.msra.mxu0 0.0
    %790 = vmatprep.subr.mxu0 0.0
    %791 = vmatpush1.msra.mxu0 0.0
    %792 = vmatprep.subr.mxu0 0.0
    %793 = vmatpush1.msra.mxu0 0.0
    %794 = vmatprep.subr.mxu0 0.0
    %795 = vmatpush1.msra.mxu0 0.0
    %796 = vmatprep.subr.mxu0 0.0
    %797 = vmatpush1.msra.mxu0 0.0
    %798 = vmatprep.subr.mxu0 0.0
    %799 = vmatpush1.msra.mxu0 0.0
    %800 = vmatprep.subr.mxu0 0.0
    %801 = vmatpush1.msra.mxu0 0.0
    %802 = vmatprep.subr.mxu0 0.0
    %803 = vmatpush1.msra.mxu0 0.0
    %804 = vmatprep.subr.mxu0 0.0
    %805 = vmatpush1.msra.mxu0 0.0
    %806 = vmatprep.subr.mxu0 0.0
    %807 = vmatpush1.msra.mxu0 0.0
    %808 = vmatprep.subr.mxu0 0.0
    %809 = vmatpush1.msra.mxu0 0.0
    %810 = vmatprep.subr.mxu0 0.0
    %811 = vmatpush1.msra.mxu0 0.0
    %812 = vmatprep.subr.mxu0 0.0
    %813 = vmatpush1.msra.mxu0 0.0
    %814 = vmatprep.subr.mxu0 0.0
    %815 = vmatpush1.msra.mxu0 0.0
    %816 = vmatprep.subr.mxu0 0.0
    %817 = vmatpush1.msra.mxu0 0.0
    %818 = vmatprep.subr.mxu0 0.0
    %819 = vmatpush1.msra.mxu0 0.0
    %820 = vmatprep.mubr.f32.mxu0 0.0
    %821 = vmatmul.mubr.f32.gmra.mrb[0].mxu0 %v730
    %v822 = vpop.f32.mrb[0].mxu0
    %v823 = vadd.f32 %v754, %v822
    %v824 = vpop.f32.mrb[0].mxu0
    %825 = vdwg.mxu0
    %vm826 = vcmask 7168
    %827 = vst.msk [vmem:[%s3] sm:$0xff] %vm826, %v823
    // Predicated region
    $region18: #{tpu_custom_call.1} parent=1 // pred_check
      _
    $region19: #{tpu_custom_call.1} parent=1 // pred_check_branch
      %829 = sbr.rel (0) target = $region21
    $region20: #{tpu_custom_call.1} parent=1 // pred_region
      _
    $region21: #{tpu_custom_call.1} parent=1 // pred_fallthru
      _
    // Predicated region
    $region22: #{tpu_custom_call.1} parent=1 // pred_check
      _
    $region23: #{tpu_custom_call.1} parent=1 // pred_check_branch
      %831 = sbr.rel (0) target = $region25
    $region24: #{tpu_custom_call.1} parent=1 // pred_region
      _
    $region25: #{tpu_custom_call.1} parent=1 // pred_fallthru
      _
    %832 = vsyncpa [#allocation3], 1

</llo_original>
